<compile_context>
chip_gen: v7x
topology: tpu7x:2x2x1
jax: 0.10.0
libtpu: 0.0.40
codegen_flags: <defaults>
</compile_context>

<pallas_src>
import math
import functools

import jax
import jax.numpy as jnp
from jax import lax
from jax.experimental import pallas as pl
from jax.experimental.pallas import tpu as pltpu

_INV_SQRT2 = 1.0 / math.sqrt(2.0)


def _round_up(a, b):
    return (a + b - 1) // b * b


def _pick_tk(dffp, tk_req):
    """Largest multiple of 128 that divides dffp and is <= ~tk_req."""
    tk = max(128, min(_round_up(tk_req, 128), dffp))
    return math.gcd(dffp // 128, tk // 128) * 128


def _vmem_capacity_bytes():
    try:
        info = pltpu.get_tpu_info()
        cap = getattr(info, "vmem_capacity_bytes", None)
        if cap:
            return int(cap)
    except Exception:
        pass
    return 64 * 1024 * 1024   # conservative fallback (v7x per-core VMEM)


def _footprint(tm, tk, resident, dp, dffp, isz):
    """Rough per-core VMEM bytes for the chosen tiling."""
    f = 2 * tm * dp * isz           # x tile (double-buffered)
    f += 2 * tm * dp * isz          # out tile (double-buffered)
    f += tm * dp * 4                # f32 accumulator scratch
    f += 2 * tm * tk * 4            # fc1/gelu f32 temporaries (headroom)
    if resident:
        f += 2 * (2 * dp * dffp + dffp) * isz   # resident W1+W2+b1, 2 buffers
    else:
        f += 2 * (2 * dp * tk + tk) * isz       # streamed W1/W2/b1 chunks
    f += 8 * 2 * dp * 4             # b2 / gamma / beta + slack
    return f


def _ffn_kernel(x_ref, w1_ref, b1_ref, w2_ref, b2_ref, gamma_ref, beta_ref,
                o_ref, acc_ref, *, eps, d_real, resident):
    """Grid: (row tiles, Dff chunks).  acc_ref: (tm, Dp) f32 accumulator."""
    k = pl.program_id(1)
    n_k = pl.num_programs(1)
    # Resident mode: weights carry all n_k chunks -> index by k.
    # Streaming mode: each grid step gets a single chunk -> index 0.
    kw = k if resident else 0

    @pl.when(k == 0)
    def _():
        # Seed the accumulator with residual + fc2 bias: saves a (tm, Dp)
        # zero store plus an extra read/add in the epilogue.
        acc_ref[...] = (x_ref[...].astype(jnp.float32)
                        + b2_ref[...].astype(jnp.float32))

    x = x_ref[...]                      # (tm, Dp), native dtype
    w1c = w1_ref[kw]                    # (Dp, tk)
    b1c = b1_ref[kw]                    # (1, tk)
    w2c = w2_ref[kw]                    # (tk, Dp)

    # fc1 chunk -> gelu -> partial fc2, accumulated in f32.  MXU operands stay
    # in their native dtype (bf16 runs at full rate); accumulation is f32.
    h = jnp.dot(x, w1c, preferred_element_type=jnp.float32)
    h = h + b1c.astype(jnp.float32)
    g = h * (0.5 * (1.0 + lax.erf(h * _INV_SQRT2)))          # HF erf-gelu
    acc_ref[...] += jnp.dot(g.astype(w2c.dtype), w2c,
                            preferred_element_type=jnp.float32)

    @pl.when(k == n_k - 1)
    def _():
        # TF-style LayerNorm over the REAL feature dim (padded lanes of the
        # accumulator are exactly zero by construction: zero-padded x, b2 and
        # W2 columns).
        y = acc_ref[...]
        dp = y.shape[-1]
        inv_d = 1.0 / d_real
        u = jnp.sum(y, axis=-1, keepdims=True) * inv_d
        d = y - u
        if dp != d_real:                      # static: only when D was padded
            lane = lax.broadcasted_iota(jnp.int32, (1, dp), 1)
            d = jnp.where(lane < d_real, d, 0.0)
        s = jnp.sum(d * d, axis=-1, keepdims=True) * inv_d
        yn = d * lax.rsqrt(s + eps)                          # EUP rsqrt
        o_ref[...] = (gamma_ref[...].astype(jnp.float32) * yn
                      + beta_ref[...].astype(jnp.float32)).astype(o_ref.dtype)


def position_wise_feed_forward(x, w1, b1, w2, b2, gamma, beta,
                               *, eps=1e-12, tm=1024, tk=1024,
                               vmem_limit_bytes=None):
    """x: (B, S, D) -> (B, S, D)."""
    B, S, D = x.shape
    Dff = w1.shape[1]
    M = B * S
    dtype = x.dtype
    isz = jnp.dtype(dtype).itemsize

    # --- lane-dense padding of the feature dims -----------------------------
    Dp = _round_up(D, 128)          # fc2 N-dim / output store lane width
    Dffp = _round_up(Dff, 128)      # fc1 lane dim / contraction dim

    # --- VMEM budget & tiling ------------------------------------------------
    vmem_cap = _vmem_capacity_bytes()
    budget = int(min(vmem_cap, 128 * 1024 * 1024) * 0.70)
    if vmem_limit_bytes is None:
        vmem_limit_bytes = min(int(vmem_cap * 0.875), 100 * 1024 * 1024)

    tm_eff = max(8, min(_round_up(tm, 8), _round_up(M, 8)))
    tk_eff = _pick_tk(Dffp, tk)

    resident_w_bytes = 2 * (2 * Dp * Dffp + Dffp) * isz   # double-buffered
    resident = resident_w_bytes <= budget // 2

    while _footprint(tm_eff, tk_eff, resident, Dp, Dffp, isz) > budget:
        if tm_eff > 64:
            tm_eff = max(64, (tm_eff // 2) // 8 * 8)
        elif tk_eff > 128:
            tk_eff = _pick_tk(Dffp, max(128, tk_eff // 2))
        elif tm_eff > 8:
            tm_eff = max(8, (tm_eff // 2) // 8 * 8)
        elif resident:
            resident = False
        else:
            break
    n_k = Dffp // tk_eff
    n_rows = pl.cdiv(M, tm_eff)      # no row padding: edge block is masked

    # --- prepare operands (pads are no-ops when already aligned) -------------
    x2 = x.reshape(M, D)
    if Dp != D:
        x2 = jnp.pad(x2, ((0, 0), (0, Dp - D)))

    # Zero padding is exact: gelu(0)=0, padded W2 rows/cols are zero.
    w1p = jnp.pad(w1, ((0, Dp - D), (0, Dffp - Dff)))
    w2p = jnp.pad(w2, ((0, Dffp - Dff), (0, Dp - D)))
    b1p = jnp.pad(b1, ((0, Dffp - Dff),))

    # Chunk axis leading so the kernel indexes w_ref[k] (cheap sublane-major
    # dynamic index, no lane-dim dynamic slicing).
    w1_3d = w1p.reshape(Dp, n_k, tk_eff).transpose(1, 0, 2)   # (n_k, Dp, tk)
    w2_3d = w2p.reshape(n_k, tk_eff, Dp)                      # (n_k, tk, Dp)
    b1_3d = b1p.reshape(n_k, 1, tk_eff)                       # (n_k, 1, tk)

    b2_2 = jnp.pad(b2, ((0, Dp - D),)).reshape(1, Dp)
    gamma_2 = jnp.pad(gamma, ((0, Dp - D),)).reshape(1, Dp)
    beta_2 = jnp.pad(beta, ((0, Dp - D),)).reshape(1, Dp)

    # --- BlockSpecs -----------------------------------------------------------
    if resident:
        # Constant block index => W1/W2/b1 are DMA'd once and stay in VMEM.
        w1_spec = pl.BlockSpec((n_k, Dp, tk_eff), lambda i, k: (0, 0, 0))
        b1_spec = pl.BlockSpec((n_k, 1, tk_eff), lambda i, k: (0, 0, 0))
        w2_spec = pl.BlockSpec((n_k, tk_eff, Dp), lambda i, k: (0, 0, 0))
    else:
        # Stream one Dff chunk per k-step (large tm amortizes the traffic).
        w1_spec = pl.BlockSpec((1, Dp, tk_eff), lambda i, k: (k, 0, 0))
        b1_spec = pl.BlockSpec((1, 1, tk_eff), lambda i, k: (k, 0, 0))
        w2_spec = pl.BlockSpec((1, tk_eff, Dp), lambda i, k: (k, 0, 0))

    out = pl.pallas_call(
        functools.partial(_ffn_kernel, eps=eps, d_real=D, resident=resident),
        out_shape=jax.ShapeDtypeStruct((M, Dp), dtype),
        grid_spec=pltpu.PrefetchScalarGridSpec(
            num_scalar_prefetch=0,
            grid=(n_rows, n_k),
            in_specs=[
                pl.BlockSpec((tm_eff, Dp), lambda i, k: (i, 0)),   # x rows
                w1_spec,                                           # W1
                b1_spec,                                           # b1
                w2_spec,                                           # W2
                pl.BlockSpec((1, Dp), lambda i, k: (0, 0)),        # b2
                pl.BlockSpec((1, Dp), lambda i, k: (0, 0)),        # gamma
                pl.BlockSpec((1, Dp), lambda i, k: (0, 0)),        # beta
            ],
            out_specs=pl.BlockSpec((tm_eff, Dp), lambda i, k: (i, 0)),
            scratch_shapes=[pltpu.VMEM((tm_eff, Dp), jnp.float32)],
        ),
        compiler_params=pltpu.CompilerParams(
            dimension_semantics=("parallel", "arbitrary"),
            vmem_limit_bytes=int(vmem_limit_bytes),
        ),
    )(x2, w1_3d, b1_3d, w2_3d, b2_2, gamma_2, beta_2)

    if Dp != D:
        out = out[:, :D]
    return out.reshape(B, S, D)


def _reference(x, w1, b1, w2, b2, gamma, beta, eps=1e-12):
    h = jnp.dot(x, w1) + b1
    g = h * 0.5 * (1.0 + lax.erf(h / math.sqrt(2.0)))
    y = jnp.dot(g, w2) + b2 + x
    u = jnp.mean(y, axis=-1, keepdims=True)
    s = jnp.mean((y - u) ** 2, axis=-1, keepdims=True)
    yn = (y - u) / jnp.sqrt(s + eps)
    return gamma * yn + beta


if __name__ == "__main__":
    # cfg = {'dim': 32, 'dim_ff': 64}; batch=2, seq=8
    B, S, D, Dff = 2, 8, 32, 64

    key = jax.random.PRNGKey(0)
    kx, k1, kb1, k2, kb2 = jax.random.split(key, 5)

    x = jax.random.normal(kx, (B, S, D), dtype=jnp.float32)

    # nn.Linear-style init: U(-1/sqrt(fan_in), 1/sqrt(fan_in)), deterministic.
    bound1 = 1.0 / math.sqrt(D)
    w1 = jax.random.uniform(k1, (D, Dff), jnp.float32, -bound1, bound1)
    b1 = jax.random.uniform(kb1, (Dff,), jnp.float32, -bound1, bound1)
    bound2 = 1.0 / math.sqrt(Dff)
    w2 = jax.random.uniform(k2, (Dff, D), jnp.float32, -bound2, bound2)
    b2 = jax.random.uniform(kb2, (D,), jnp.float32, -bound2, bound2)
    gamma = jnp.ones((D,), jnp.float32)   # LayerNorm.gamma init
    beta = jnp.zeros((D,), jnp.float32)   # LayerNorm.beta init

    out = position_wise_feed_forward(x, w1, b1, w2, b2, gamma, beta)
    out = jax.block_until_ready(out)

    ref = _reference(x, w1, b1, w2, b2, gamma, beta)
    assert out.shape == (B, S, D)
    assert jnp.allclose(out, ref, atol=1e-5, rtol=1e-5), "mismatch vs reference"

    print("KERNEL_OK")
</pallas_src>

<mosaic_0001>
module attributes {stable_mosaic.version = 11 : i64} {
  func.func @_ffn_kernel(%arg0: i32, %arg1: i32, %arg2: memref<16x128xf32, #tpu.memory_space<vmem>>, %arg3: memref<1x128x128xf32, #tpu.memory_space<vmem>>, %arg4: memref<1x1x128xf32, #tpu.memory_space<vmem>>, %arg5: memref<1x128x128xf32, #tpu.memory_space<vmem>>, %arg6: memref<1x128xf32, #tpu.memory_space<vmem>>, %arg7: memref<1x128xf32, #tpu.memory_space<vmem>>, %arg8: memref<1x128xf32, #tpu.memory_space<vmem>>, %arg9: memref<16x128xf32, #tpu.memory_space<vmem>>, %arg10: memref<16x128xf32, #tpu.memory_space<vmem>>) attributes {dimension_semantics = [#tpu.dimension_semantics<parallel>, #tpu.dimension_semantics<arbitrary>], iteration_bounds = array<i64: 1, 1>, scalar_prefetch = 0 : i64, scratch_operands = 1 : i64, tpu.core_type = #tpu.core_type<tc>, window_params = [{transform_indices = @transform_0, window_bounds = array<i64: 16, 128>}, {pipeline_mode = #tpu.pipeline_mode<synchronous>, transform_indices = @transform_1, window_bounds = array<i64: 1, 128, 128>}, {pipeline_mode = #tpu.pipeline_mode<synchronous>, transform_indices = @transform_2, window_bounds = array<i64: 1, 1, 128>}, {pipeline_mode = #tpu.pipeline_mode<synchronous>, transform_indices = @transform_3, window_bounds = array<i64: 1, 128, 128>}, {pipeline_mode = #tpu.pipeline_mode<synchronous>, transform_indices = @transform_4, window_bounds = array<i64: 1, 128>}, {pipeline_mode = #tpu.pipeline_mode<synchronous>, transform_indices = @transform_5, window_bounds = array<i64: 1, 128>}, {pipeline_mode = #tpu.pipeline_mode<synchronous>, transform_indices = @transform_6, window_bounds = array<i64: 1, 128>}, {transform_indices = @transform_7, window_bounds = array<i64: 16, 128>}]} {
    %c0_i32 = arith.constant 0 : i32
    %0 = arith.cmpi eq, %arg1, %c0_i32 : i32
    %1 = arith.extui %0 : i1 to i32
    %c0_i32_0 = arith.constant 0 : i32
    %2 = arith.cmpi ne, %1, %c0_i32_0 : i32
    scf.if %2 {
      %c0_18 = arith.constant 0 : index
      %c0_19 = arith.constant 0 : index
      %31 = vector.load %arg2[%c0_18, %c0_19] : memref<16x128xf32, #tpu.memory_space<vmem>>, vector<16x128xf32>
      %c0_20 = arith.constant 0 : index
      %c0_21 = arith.constant 0 : index
      %32 = vector.load %arg6[%c0_20, %c0_21] : memref<1x128xf32, #tpu.memory_space<vmem>>, vector<1x128xf32>
      %33 = vector.broadcast %32 : vector<1x128xf32> to vector<16x128xf32>
      %34 = arith.addf %31, %33 : vector<16x128xf32>
      %c0_22 = arith.constant 0 : index
      %c0_23 = arith.constant 0 : index
      %35 = vector.load %arg10[%c0_22, %c0_23] : memref<16x128xf32, #tpu.memory_space<vmem>>, vector<16x128xf32>
      tpu.vector_store %arg10[%c0_22, %c0_23], %34 {strides = array<i32>} : memref<16x128xf32, #tpu.memory_space<vmem>>, vector<16x128xf32>,
    } else {
    }
    %c0 = arith.constant 0 : index
    %c0_1 = arith.constant 0 : index
    %3 = vector.load %arg2[%c0, %c0_1] : memref<16x128xf32, #tpu.memory_space<vmem>>, vector<16x128xf32>
    %4 = arith.index_cast %arg1 : i32 to index
    %c0_2 = arith.constant 0 : index
    %c0_3 = arith.constant 0 : index
    %5 = vector.load %arg3[%4, %c0_2, %c0_3] : memref<1x128x128xf32, #tpu.memory_space<vmem>>, vector<1x128x128xf32>
    %6 = vector.shape_cast %5 : vector<1x128x128xf32> to vector<128x128xf32>
    %7 = arith.index_cast %arg1 : i32 to index
    %c0_4 = arith.constant 0 : index
    %c0_5 = arith.constant 0 : index
    %8 = vector.load %arg4[%7, %c0_4, %c0_5] : memref<1x1x128xf32, #tpu.memory_space<vmem>>, vector<1x1x128xf32>
    %9 = vector.shape_cast %8 : vector<1x1x128xf32> to vector<1x128xf32>
    %10 = arith.index_cast %arg1 : i32 to index
    %c0_6 = arith.constant 0 : index
    %c0_7 = arith.constant 0 : index
    %11 = vector.load %arg5[%10, %c0_6, %c0_7] : memref<1x128x128xf32, #tpu.memory_space<vmem>>, vector<1x128x128xf32>
    %12 = vector.shape_cast %11 : vector<1x128x128xf32> to vector<128x128xf32>
    %cst = arith.constant dense<0.000000e+00> : vector<16x128xf32>
    %13 = tpu.matmul %3, %6, %cst {dimension_numbers = #tpu.dot_dimension_numbers<[1], [0], [0], [1], [0, 0, 1, 1], [], []>} : vector<16x128xf32>, vector<128x128xf32>, vector<16x128xf32> -> vector<16x128xf32>
    %14 = vector.broadcast %9 : vector<1x128xf32> to vector<16x128xf32>
    %15 = arith.addf %13, %14 : vector<16x128xf32>
    %cst_8 = arith.constant 0.707106769 : f32
    %16 = vector.broadcast %cst_8 : f32 to vector<16x128xf32>
    %17 = arith.mulf %15, %16 : vector<16x128xf32>
    %18 = math.erf %17 : vector<16x128xf32>
    %cst_9 = arith.constant 1.000000e+00 : f32
    %19 = vector.broadcast %cst_9 : f32 to vector<16x128xf32>
    %20 = arith.addf %19, %18 : vector<16x128xf32>
    %cst_10 = arith.constant 5.000000e-01 : f32
    %21 = vector.broadcast %cst_10 : f32 to vector<16x128xf32>
    %22 = arith.mulf %21, %20 : vector<16x128xf32>
    %23 = arith.mulf %15, %22 : vector<16x128xf32>
    %c0_11 = arith.constant 0 : index
    %c0_12 = arith.constant 0 : index
    %24 = vector.load %arg10[%c0_11, %c0_12] : memref<16x128xf32, #tpu.memory_space<vmem>>, vector<16x128xf32>
    %cst_13 = arith.constant dense<0.000000e+00> : vector<16x128xf32>
    %25 = tpu.matmul %23, %12, %cst_13 {dimension_numbers = #tpu.dot_dimension_numbers<[1], [0], [0], [1], [0, 0, 1, 1], [], []>} : vector<16x128xf32>, vector<128x128xf32>, vector<16x128xf32> -> vector<16x128xf32>
    %26 = arith.addf %24, %25 : vector<16x128xf32>
    %c0_14 = arith.constant 0 : index
    %c0_15 = arith.constant 0 : index
    %27 = vector.load %arg10[%c0_14, %c0_15] : memref<16x128xf32, #tpu.memory_space<vmem>>, vector<16x128xf32>
    tpu.vector_store %arg10[%c0_14, %c0_15], %26 {strides = array<i32>} : memref<16x128xf32, #tpu.memory_space<vmem>>, vector<16x128xf32>,
    %c0_i32_16 = arith.constant 0 : i32
    %28 = arith.cmpi eq, %arg1, %c0_i32_16 : i32
    %29 = arith.extui %28 : i1 to i32
    %c0_i32_17 = arith.constant 0 : i32
    %30 = arith.cmpi ne, %29, %c0_i32_17 : i32
    scf.if %30 {
      %c0_18 = arith.constant 0 : index
      %c0_19 = arith.constant 0 : index
      %31 = vector.load %arg10[%c0_18, %c0_19] : memref<16x128xf32, #tpu.memory_space<vmem>>, vector<16x128xf32>
      %cst_20 = arith.constant dense<0.000000e+00> : vector<16xf32>
      %32 = vector.multi_reduction <add>, %31, %cst_20 [1] : vector<16x128xf32> to vector<16xf32>
      %33 = vector.shape_cast %32 : vector<16xf32> to vector<16x1xf32>
      %cst_21 = arith.constant 3.125000e-02 : f32
      %34 = vector.broadcast %cst_21 : f32 to vector<16x1xf32>
      %35 = arith.mulf %33, %34 : vector<16x1xf32>
      %36 = vector.broadcast %35 : vector<16x1xf32> to vector<16x128xf32>
      %37 = arith.subf %31, %36 : vector<16x128xf32>
      %38 = tpu.iota {dimensions = array<i32: 1>} : vector<1x128xi32>
      %c32_i32 = arith.constant 32 : i32
      %39 = vector.broadcast %c32_i32 : i32 to vector<1x128xi32>
      %40 = arith.cmpi slt, %38, %39 : vector<1x128xi32>
      %cst_22 = arith.constant 0.000000e+00 : f32
      %41 = vector.shape_cast %40 : vector<1x128xi1> to vector<1x128xi1>
      %42 = vector.broadcast %41 : vector<1x128xi1> to vector<16x128xi1>
      %43 = vector.broadcast %cst_22 : f32 to vector<16x128xf32>
      %44 = arith.select %42, %37, %43 : vector<16x128xi1>, vector<16x128xf32>
      %45 = arith.mulf %44, %44 : vector<16x128xf32>
      %cst_23 = arith.constant dense<0.000000e+00> : vector<16xf32>
      %46 = vector.multi_reduction <add>, %45, %cst_23 [1] : vector<16x128xf32> to vector<16xf32>
      %47 = vector.shape_cast %46 : vector<16xf32> to vector<16x1xf32>
      %cst_24 = arith.constant 3.125000e-02 : f32
      %48 = vector.broadcast %cst_24 : f32 to vector<16x1xf32>
      %49 = arith.mulf %47, %48 : vector<16x1xf32>
      %cst_25 = arith.constant 9.99999996E-13 : f32
      %50 = vector.broadcast %cst_25 : f32 to vector<16x1xf32>
      %51 = arith.addf %49, %50 : vector<16x1xf32>
      %52 = math.rsqrt %51 : vector<16x1xf32>
      %53 = vector.broadcast %52 : vector<16x1xf32> to vector<16x128xf32>
      %54 = arith.mulf %44, %53 : vector<16x128xf32>
      %c0_26 = arith.constant 0 : index
      %c0_27 = arith.constant 0 : index
      %55 = vector.load %arg7[%c0_26, %c0_27] : memref<1x128xf32, #tpu.memory_space<vmem>>, vector<1x128xf32>
      %56 = vector.broadcast %55 : vector<1x128xf32> to vector<16x128xf32>
      %57 = arith.mulf %56, %54 : vector<16x128xf32>
      %c0_28 = arith.constant 0 : index
      %c0_29 = arith.constant 0 : index
      %58 = vector.load %arg8[%c0_28, %c0_29] : memref<1x128xf32, #tpu.memory_space<vmem>>, vector<1x128xf32>
      %59 = vector.broadcast %58 : vector<1x128xf32> to vector<16x128xf32>
      %60 = arith.addf %57, %59 : vector<16x128xf32>
      %c0_30 = arith.constant 0 : index
      %c0_31 = arith.constant 0 : index
      %61 = vector.load %arg9[%c0_30, %c0_31] : memref<16x128xf32, #tpu.memory_space<vmem>>, vector<16x128xf32>
      tpu.vector_store %arg9[%c0_30, %c0_31], %60 {strides = array<i32>} : memref<16x128xf32, #tpu.memory_space<vmem>>, vector<16x128xf32>,
    } else {
    }
    return
  }
  func.func @transform_0(%arg0: i32, %arg1: i32) -> (i32, i32) {
    %c0_i32 = arith.constant 0 : i32
    %c0_i32_0 = arith.constant 0 : i32
    return %arg0, %c0_i32 : i32, i32
  }
  func.func @transform_1(%arg0: i32, %arg1: i32) -> (i32, i32, i32) {
    %c0_i32 = arith.constant 0 : i32
    %c0_i32_0 = arith.constant 0 : i32
    %c0_i32_1 = arith.constant 0 : i32
    %c0_i32_2 = arith.constant 0 : i32
    return %c0_i32, %c0_i32_0, %c0_i32_1 : i32, i32, i32
  }
  func.func @transform_2(%arg0: i32, %arg1: i32) -> (i32, i32, i32) {
    %c0_i32 = arith.constant 0 : i32
    %c0_i32_0 = arith.constant 0 : i32
    %c0_i32_1 = arith.constant 0 : i32
    %c0_i32_2 = arith.constant 0 : i32
    return %c0_i32, %c0_i32_0, %c0_i32_1 : i32, i32, i32
  }
  func.func @transform_3(%arg0: i32, %arg1: i32) -> (i32, i32, i32) {
    %c0_i32 = arith.constant 0 : i32
    %c0_i32_0 = arith.constant 0 : i32
    %c0_i32_1 = arith.constant 0 : i32
    %c0_i32_2 = arith.constant 0 : i32
    return %c0_i32, %c0_i32_0, %c0_i32_1 : i32, i32, i32
  }
  func.func @transform_4(%arg0: i32, %arg1: i32) -> (i32, i32) {
    %c0_i32 = arith.constant 0 : i32
    %c0_i32_0 = arith.constant 0 : i32
    %c0_i32_1 = arith.constant 0 : i32
    return %c0_i32, %c0_i32_0 : i32, i32
  }
  func.func @transform_5(%arg0: i32, %arg1: i32) -> (i32, i32) {
    %c0_i32 = arith.constant 0 : i32
    %c0_i32_0 = arith.constant 0 : i32
    %c0_i32_1 = arith.constant 0 : i32
    return %c0_i32, %c0_i32_0 : i32, i32
  }
  func.func @transform_6(%arg0: i32, %arg1: i32) -> (i32, i32) {
    %c0_i32 = arith.constant 0 : i32
    %c0_i32_0 = arith.constant 0 : i32
    %c0_i32_1 = arith.constant 0 : i32
    return %c0_i32, %c0_i32_0 : i32, i32
  }
  func.func @transform_7(%arg0: i32, %arg1: i32) -> (i32, i32) {
    %c0_i32 = arith.constant 0 : i32
    %c0_i32_0 = arith.constant 0 : i32
    return %arg0, %c0_i32 : i32, i32
  }
}

</mosaic_0001>

<llo_original>
// kernel: tpu_custom_call.1
$region0: #{tpu_custom_call.1}
  #allocation0 [shape = 'u32[]', space=smem, size = 0x4, offset = 0x4, fixed_abs, tag = 'smem constant byte address 0x4 - core index']
  #allocation1 [shape = 'u32[144,128]{1,0:T(1,128)}', space=vmem, size = 0x12000, scoped, tag = 'internal scratch']
  #allocation2 [shape = 'f32[16,128]{1,0:T(8,128)}', space=vmem, size = 0x2000, scoped, tag = 'scratch operand']
  %s0 = inlined_call_operand.hbm [shape: f32[16,128], index: 0, kind: input, shape index: {}]
  %s1 = inlined_call_operand.hbm [shape: f32[1,128,128], index: 1, kind: input, shape index: {}]
  %s2 = inlined_call_operand.vmem [shape: f32[1,1,128], index: 2, kind: input, shape index: {}]
  %s3 = inlined_call_operand.hbm [shape: f32[1,128,128], index: 3, kind: input, shape index: {}]
  %s4 = inlined_call_operand.vmem [shape: f32[1,128], index: 4, kind: input, shape index: {}]
  %s5 = inlined_call_operand.vmem [shape: f32[1,128], index: 5, kind: input, shape index: {}]
  %s6 = inlined_call_operand.vmem [shape: f32[1,128], index: 6, kind: input, shape index: {}]
  %s7 = inlined_call_operand.hbm [shape: f32[16,128], index: 7, kind: output, shape index: {}]
  %s8 = sld [smem:[#allocation0]]
  $region58: #{tpu_custom_call.1} parent=0
    _
  %s10 = ssub.s32 1, %s8
  %s11 = scalar_select 0, %s10, %s8
  $region1: #{tpu_custom_call.1} parent=0
    #allocation3 [shape = 'u8[8192]{0}', space=vmem, size = 0x2000, scoped, tag = 'input window, operand 0, single buffered']
    #allocation4 [shape = 's32[1]{0}', space=sflag, size = 0x4, scoped, tag = 'scoped memory for tpu_custom_call.1']
    #allocation5 [shape = 's32[1]{0}', space=sflag, size = 0x4, scoped, tag = 'scoped memory for tpu_custom_call.1']
    #allocation6 [shape = 'u8[65536]{0}', space=vmem, size = 0x10000, scoped, tag = 'input window, operand 1, single buffered']
    #allocation7 [shape = 's32[1]{0}', space=sflag, size = 0x4, scoped, tag = 'scoped memory for tpu_custom_call.1']
    #allocation8 [shape = 'u8[65536]{0}', space=vmem, size = 0x10000, scoped, tag = 'input window, operand 3, single buffered']
    #allocation9 [shape = 'u8[8192]{0}', space=vmem, size = 0x2000, scoped, tag = 'output window, operand 0, single buffered']
    %12 = vsyncpa [#allocation4], 0
    %13 = vsyncpa [#allocation7], 0
    %14 = vsyncpa [#allocation5], 0
    // Predicated region
    $region2: #{tpu_custom_call.1} parent=1 // pred_check
      _
    $region3: #{tpu_custom_call.1} parent=1 // pred_check_branch
      %16 = sbr.rel (0) target = $region5
    $region4: #{tpu_custom_call.1} parent=1 // pred_region
      %s18 = ssub.s32 256, 256
      %19 = vsyncadd [#allocation4], %s18
      %s20 = sshll.u32 [#allocation3], 4
      %s21 = int_to_ptr.vmem [resolvable:$true] %s20
      %26 = dma.hbm_to_vmem [thread:$0]  %s0, 256, %s21, [#allocation4], 128, 128, 8
    $region5: #{tpu_custom_call.1} parent=1 // pred_fallthru
      _
    // Predicated region
    $region6: #{tpu_custom_call.1} parent=1 // pred_check
      _
    $region7: #{tpu_custom_call.1} parent=1 // pred_check_branch
      %28 = sbr.rel (0) target = $region9
    $region8: #{tpu_custom_call.1} parent=1 // pred_region
      %s30 = ssub.s32 2048, 2048
      %31 = vsyncadd [#allocation7], %s30
      %s32 = sshll.u32 [#allocation6], 4
      %s33 = int_to_ptr.vmem [resolvable:$true] %s32
      %38 = dma.hbm_to_vmem [thread:$0]  %s1, 2048, %s33, [#allocation7], 128, 128, 8
    $region9: #{tpu_custom_call.1} parent=1 // pred_fallthru
      _
    // Predicated region
    $region10: #{tpu_custom_call.1} parent=1 // pred_check
      _
    $region11: #{tpu_custom_call.1} parent=1 // pred_check_branch
      %40 = sbr.rel (0) target = $region13
    $region12: #{tpu_custom_call.1} parent=1 // pred_region
      _
    $region13: #{tpu_custom_call.1} parent=1 // pred_fallthru
      _
    // Predicated region
    $region14: #{tpu_custom_call.1} parent=1 // pred_check
      _
    $region15: #{tpu_custom_call.1} parent=1 // pred_check_branch
      %42 = sbr.rel (0) target = $region17
    $region16: #{tpu_custom_call.1} parent=1 // pred_region
      %s44 = ssub.s32 2048, 2048
      %45 = vsyncadd [#allocation7], %s44
      %s46 = sshll.u32 [#allocation8], 4
      %s47 = int_to_ptr.vmem [resolvable:$true] %s46
      %52 = dma.hbm_to_vmem [thread:$0]  %s3, 2048, %s47, [#allocation7], 128, 128, 8
    $region17: #{tpu_custom_call.1} parent=1 // pred_fallthru
      _
    // Predicated region
    $region18: #{tpu_custom_call.1} parent=1 // pred_check
      _
    $region19: #{tpu_custom_call.1} parent=1 // pred_check_branch
      %54 = sbr.rel (0) target = $region21
    $region20: #{tpu_custom_call.1} parent=1 // pred_region
      _
    $region21: #{tpu_custom_call.1} parent=1 // pred_fallthru
      _
    // Predicated region
    $region22: #{tpu_custom_call.1} parent=1 // pred_check
      _
    $region23: #{tpu_custom_call.1} parent=1 // pred_check_branch
      %56 = sbr.rel (0) target = $region25
    $region24: #{tpu_custom_call.1} parent=1 // pred_region
      _
    $region25: #{tpu_custom_call.1} parent=1 // pred_fallthru
      _
    // Predicated region
    $region26: #{tpu_custom_call.1} parent=1 // pred_check
      _
    $region27: #{tpu_custom_call.1} parent=1 // pred_check_branch
      %58 = sbr.rel (0) target = $region29
    $region28: #{tpu_custom_call.1} parent=1 // pred_region
      _
    $region29: #{tpu_custom_call.1} parent=1 // pred_fallthru
      _
    // Predicated region
    $region30: #{tpu_custom_call.1} parent=1 // pred_check
      _
    $region31: #{tpu_custom_call.1} parent=1 // pred_check_branch
      %60 = sbr.rel (0) target = $region33
    $region32: #{tpu_custom_call.1} parent=1 // pred_region
      %61 = dma.done [#allocation4], 256
    $region33: #{tpu_custom_call.1} parent=1 // pred_fallthru
      _
    // Predicated region
    $region34: #{tpu_custom_call.1} parent=1 // pred_check
      _
    $region35: #{tpu_custom_call.1} parent=1 // pred_check_branch
      %63 = sbr.rel (0) target = $region37
    $region36: #{tpu_custom_call.1} parent=1 // pred_region
      %64 = dma.done [#allocation7], 2048
    $region37: #{tpu_custom_call.1} parent=1 // pred_fallthru
      _
    // Predicated region
    $region38: #{tpu_custom_call.1} parent=1 // pred_check
      _
    $region39: #{tpu_custom_call.1} parent=1 // pred_check_branch
      %66 = sbr.rel (0) target = $region41
    $region40: #{tpu_custom_call.1} parent=1 // pred_region
      %67 = dma.done [#allocation7], 2048
    $region41: #{tpu_custom_call.1} parent=1 // pred_fallthru
      _
    %p68 = scmp.eq.s32.totalorder 0, 0
    // Predicated region
    $region42: #{tpu_custom_call.1} parent=1 // pred_check
      %p69 = pneg %p68
    $region43: #{tpu_custom_call.1} parent=1 // pred_check_branch
      %71 = sbr.rel (%p69) target = $region45
    $region44: #{tpu_custom_call.1} parent=1 // pred_region
      %v72 = vld [vmem:[#allocation3] sm:$0xff]
      %v73 = vld [vmem:[#allocation3 + $0x8] sm:$0xff]
      %v74 = vld [vmem:[%s4] sm:$0x1]
      %v76 = vlaneseq
      %v77 = vshrl.u32 %v76, 7
      %v78 = vsub.s32 0, %v77
      %v79 = vrot.slane %v74, %v78
      %v81 = vadd.f32 %v72, %v79
      %v82 = vadd.f32 %v73, %v79
      %83 = vst [vmem:[#allocation2] sm:$0xff] %v81
      %84 = vst [vmem:[#allocation2 + $0x8] sm:$0xff] %v82
    $region45: #{tpu_custom_call.1} parent=1 // pred_fallthru
      _
    %v85 = vld [vmem:[#allocation3] sm:$0xff]
    %v86 = vld [vmem:[#allocation3 + $0x8] sm:$0xff]
    %s87 = smul.u32 0, 128
    %s88 = scalar_lea.vmem [#allocation6], %s87
    %v89 = vld [vmem:[%s88] sm:$0xff]
    %v90 = vld [vmem:[%s88 + $0x8] sm:$0xff]
    %v91 = vld [vmem:[%s88 + $0x10] sm:$0xff]
    %v92 = vld [vmem:[%s88 + $0x18] sm:$0xff]
    %v93 = vld [vmem:[%s88 + $0x20] sm:$0xff]
    %v94 = vld [vmem:[%s88 + $0x28] sm:$0xff]
    %v95 = vld [vmem:[%s88 + $0x30] sm:$0xff]
    %v96 = vld [vmem:[%s88 + $0x38] sm:$0xff]
    %v97 = vld [vmem:[%s88 + $0x40] sm:$0xff]
    %v98 = vld [vmem:[%s88 + $0x48] sm:$0xff]
    %v99 = vld [vmem:[%s88 + $0x50] sm:$0xff]
    %v100 = vld [vmem:[%s88 + $0x58] sm:$0xff]
    %v101 = vld [vmem:[%s88 + $0x60] sm:$0xff]
    %v102 = vld [vmem:[%s88 + $0x68] sm:$0xff]
    %v103 = vld [vmem:[%s88 + $0x70] sm:$0xff]
    %v104 = vld [vmem:[%s88 + $0x78] sm:$0xff]
    %v105 = vld [vmem:[%s2] sm:$0x1]
    %s106 = scalar_lea.vmem [#allocation8], %s87
    %v107 = vld [vmem:[%s106] sm:$0xff]
    %v108 = vld [vmem:[%s106 + $0x8] sm:$0xff]
    %v109 = vld [vmem:[%s106 + $0x10] sm:$0xff]
    %v110 = vld [vmem:[%s106 + $0x18] sm:$0xff]
    %v111 = vld [vmem:[%s106 + $0x20] sm:$0xff]
    %v112 = vld [vmem:[%s106 + $0x28] sm:$0xff]
    %v113 = vld [vmem:[%s106 + $0x30] sm:$0xff]
    %v114 = vld [vmem:[%s106 + $0x38] sm:$0xff]
    %v115 = vld [vmem:[%s106 + $0x40] sm:$0xff]
    %v116 = vld [vmem:[%s106 + $0x48] sm:$0xff]
    %v117 = vld [vmem:[%s106 + $0x50] sm:$0xff]
    %v118 = vld [vmem:[%s106 + $0x58] sm:$0xff]
    %v119 = vld [vmem:[%s106 + $0x60] sm:$0xff]
    %v120 = vld [vmem:[%s106 + $0x68] sm:$0xff]
    %v121 = vld [vmem:[%s106 + $0x70] sm:$0xff]
    %v122 = vld [vmem:[%s106 + $0x78] sm:$0xff]
    %v124 = vlaneseq
    %v125 = vshrl.u32 %v124, 7
    %v126 = vsub.s32 0, %v125
    %v127 = vrot.slane %v105, %v126
    %129 = vmatprep.subr.mxu0 0.0
    %130 = vmatpush1.msra.mxu0 %v89
    %131 = vmatprep.subr.mxu0 0.0
    %132 = vmatpush1.msra.mxu0 %v90
    %133 = vmatprep.subr.mxu0 0.0
    %134 = vmatpush1.msra.mxu0 %v91
    %135 = vmatprep.subr.mxu0 0.0
    %136 = vmatpush1.msra.mxu0 %v92
    %137 = vmatprep.subr.mxu0 0.0
    %138 = vmatpush1.msra.mxu0 %v93
    %139 = vmatprep.subr.mxu0 0.0
    %140 = vmatpush1.msra.mxu0 %v94
    %141 = vmatprep.subr.mxu0 0.0
    %142 = vmatpush1.msra.mxu0 %v95
    %143 = vmatprep.subr.mxu0 0.0
    %144 = vmatpush1.msra.mxu0 %v96
    %145 = vmatprep.subr.mxu0 0.0
    %146 = vmatpush1.msra.mxu0 %v97
    %147 = vmatprep.subr.mxu0 0.0
    %148 = vmatpush1.msra.mxu0 %v98
    %149 = vmatprep.subr.mxu0 0.0
    %150 = vmatpush1.msra.mxu0 %v99
    %151 = vmatprep.subr.mxu0 0.0
    %152 = vmatpush1.msra.mxu0 %v100
    %153 = vmatprep.subr.mxu0 0.0
    %154 = vmatpush1.msra.mxu0 %v101
    %155 = vmatprep.subr.mxu0 0.0
    %156 = vmatpush1.msra.mxu0 %v102
    %157 = vmatprep.subr.mxu0 0.0
    %158 = vmatpush1.msra.mxu0 %v103
    %159 = vmatprep.subr.mxu0 0.0
    %160 = vmatpush1.msra.mxu0 %v104
    %161 = vmatprep.subr.mxu0 0.0
    %162 = vmatpush1.msra.mxu0 0.0
    %163 = vmatprep.subr.mxu0 0.0
    %164 = vmatpush1.msra.mxu0 0.0
    %165 = vmatprep.subr.mxu0 0.0
    %166 = vmatpush1.msra.mxu0 0.0
    %167 = vmatprep.subr.mxu0 0.0
    %168 = vmatpush1.msra.mxu0 0.0
    %169 = vmatprep.subr.mxu0 0.0
    %170 = vmatpush1.msra.mxu0 0.0
    %171 = vmatprep.subr.mxu0 0.0
    %172 = vmatpush1.msra.mxu0 0.0
    %173 = vmatprep.subr.mxu0 0.0
    %174 = vmatpush1.msra.mxu0 0.0
    %175 = vmatprep.subr.mxu0 0.0
    %176 = vmatpush1.msra.mxu0 0.0
    %177 = vmatprep.subr.mxu0 0.0
    %178 = vmatpush1.msra.mxu0 0.0
    %179 = vmatprep.subr.mxu0 0.0
    %180 = vmatpush1.msra.mxu0 0.0
    %181 = vmatprep.subr.mxu0 0.0
    %182 = vmatpush1.msra.mxu0 0.0
    %183 = vmatprep.subr.mxu0 0.0
    %184 = vmatpush1.msra.mxu0 0.0
    %185 = vmatprep.subr.mxu0 0.0
    %186 = vmatpush1.msra.mxu0 0.0
    %187 = vmatprep.subr.mxu0 0.0
    %188 = vmatpush1.msra.mxu0 0.0
    %189 = vmatprep.subr.mxu0 0.0
    %190 = vmatpush1.msra.mxu0 0.0
    %191 = vmatprep.subr.mxu0 0.0
    %192 = vmatpush1.msra.mxu0 0.0
    %193 = vmatprep.mubr.f32.mxu0 0.0
    %194 = vmatmul.mubr.f32.gmra.mrb[0].mxu0 %v85
    %v195 = vpop.f32.mrb[0].mxu0
    %v196 = vadd.f32 %v127, %v195
    %v197 = vpop.f32.mrb[0].mxu0
    %198 = vmatprep.mubr.f32.mxu0 0.0
    %199 = vmatmul.mubr.f32.gmra.mrb[0].mxu0 %v86
    %v200 = vpop.f32.mrb[0].mxu0
    %v201 = vadd.f32 %v127, %v200
    %v202 = vpop.f32.mrb[0].mxu0
    %203 = vdwg.mxu0
    %v204 = vmul.f32 %v196, 0.70710677
    %v205 = vmul.f32 %v201, 0.70710677
    %v206 = verf.f32.pop %v204
    %v207 = verf.f32.pop %v205
    %v208 = vadd.f32 %v206, 1.0
    %v209 = vadd.f32 %v207, 1.0
    %v210 = vmul.f32 %v208, 0.5
    %v211 = vmul.f32 %v209, 0.5
    %v212 = vmul.f32 %v196, %v210
    %v213 = vmul.f32 %v201, %v211
    %v214 = vld [vmem:[#allocation2] sm:$0xff]
    %v215 = vld [vmem:[#allocation2 + $0x8] sm:$0xff]
    %216 = vmatprep.subr.mxu0 0.0
    %217 = vmatpush1.msra.mxu0 %v107
    %218 = vmatprep.subr.mxu0 0.0
    %219 = vmatpush1.msra.mxu0 %v108
    %220 = vmatprep.subr.mxu0 0.0
    %221 = vmatpush1.msra.mxu0 %v109
    %222 = vmatprep.subr.mxu0 0.0
    %223 = vmatpush1.msra.mxu0 %v110
    %224 = vmatprep.subr.mxu0 0.0
    %225 = vmatpush1.msra.mxu0 %v111
    %226 = vmatprep.subr.mxu0 0.0
    %227 = vmatpush1.msra.mxu0 %v112
    %228 = vmatprep.subr.mxu0 0.0
    %229 = vmatpush1.msra.mxu0 %v113
    %230 = vmatprep.subr.mxu0 0.0
    %231 = vmatpush1.msra.mxu0 %v114
    %232 = vmatprep.subr.mxu0 0.0
    %233 = vmatpush1.msra.mxu0 %v115
    %234 = vmatprep.subr.mxu0 0.0
    %235 = vmatpush1.msra.mxu0 %v116
    %236 = vmatprep.subr.mxu0 0.0
    %237 = vmatpush1.msra.mxu0 %v117
    %238 = vmatprep.subr.mxu0 0.0
    %239 = vmatpush1.msra.mxu0 %v118
    %240 = vmatprep.subr.mxu0 0.0
    %241 = vmatpush1.msra.mxu0 %v119
    %242 = vmatprep.subr.mxu0 0.0
    %243 = vmatpush1.msra.mxu0 %v120
    %244 = vmatprep.subr.mxu0 0.0
    %245 = vmatpush1.msra.mxu0 %v121
    %246 = vmatprep.subr.mxu0 0.0
    %247 = vmatpush1.msra.mxu0 %v122
    %248 = vmatprep.subr.mxu0 0.0
    %249 = vmatpush1.msra.mxu0 0.0
    %250 = vmatprep.subr.mxu0 0.0
    %251 = vmatpush1.msra.mxu0 0.0
    %252 = vmatprep.subr.mxu0 0.0
    %253 = vmatpush1.msra.mxu0 0.0
    %254 = vmatprep.subr.mxu0 0.0
    %255 = vmatpush1.msra.mxu0 0.0
    %256 = vmatprep.subr.mxu0 0.0
    %257 = vmatpush1.msra.mxu0 0.0
    %258 = vmatprep.subr.mxu0 0.0
    %259 = vmatpush1.msra.mxu0 0.0
    %260 = vmatprep.subr.mxu0 0.0
    %261 = vmatpush1.msra.mxu0 0.0
    %262 = vmatprep.subr.mxu0 0.0
    %263 = vmatpush1.msra.mxu0 0.0
    %264 = vmatprep.subr.mxu0 0.0
    %265 = vmatpush1.msra.mxu0 0.0
    %266 = vmatprep.subr.mxu0 0.0
    %267 = vmatpush1.msra.mxu0 0.0
    %268 = vmatprep.subr.mxu0 0.0
    %269 = vmatpush1.msra.mxu0 0.0
    %270 = vmatprep.subr.mxu0 0.0
    %271 = vmatpush1.msra.mxu0 0.0
    %272 = vmatprep.subr.mxu0 0.0
    %273 = vmatpush1.msra.mxu0 0.0
    %274 = vmatprep.subr.mxu0 0.0
    %275 = vmatpush1.msra.mxu0 0.0
    %276 = vmatprep.subr.mxu0 0.0
    %277 = vmatpush1.msra.mxu0 0.0
    %278 = vmatprep.subr.mxu0 0.0
    %279 = vmatpush1.msra.mxu0 0.0
    %280 = vmatprep.mubr.f32.mxu0 0.0
    %281 = vmatmul.mubr.f32.gmra.mrb[0].mxu0 %v212
    %v282 = vpop.f32.mrb[0].mxu0
    %v283 = vadd.f32 0.0, %v282
    %v284 = vpop.f32.mrb[0].mxu0
    %285 = vmatprep.mubr.f32.mxu0 0.0
    %286 = vmatmul.mubr.f32.gmra.mrb[0].mxu0 %v213
    %v287 = vpop.f32.mrb[0].mxu0
    %v288 = vadd.f32 0.0, %v287
    %v289 = vpop.f32.mrb[0].mxu0
    %290 = vdwg.mxu0
    %v291 = vadd.f32 %v214, %v283
    %v292 = vadd.f32 %v215, %v288
    %293 = vst [vmem:[#allocation2] sm:$0xff] %v291
    %294 = vst [vmem:[#allocation2 + $0x8] sm:$0xff] %v292
    // Predicated region
    $region46: #{tpu_custom_call.1} parent=1 // pred_check
      %p295 = pneg %p68
    $region47: #{tpu_custom_call.1} parent=1 // pred_check_branch
      %297 = sbr.rel (%p295) target = $region49
    $region48: #{tpu_custom_call.1} parent=1 // pred_region
      %v298 = vld [vmem:[#allocation2] sm:$0xff]
      %v299 = vld [vmem:[#allocation2 + $0x8] sm:$0xff]
      %300 = vadd.xlane.f32.xlu0 %v298
      %v301 = vpop.xlane.xlu0 %300
      %302 = vadd.xlane.f32.xlu0 %v299
      %v303 = vpop.xlane.xlu0 %302
      %v304 = vmul.f32 %v301, 0.03125
      %v305 = vmul.f32 %v303, 0.03125
      %v306 = vsub.f32 %v298, %v304
      %v307 = vsub.f32 %v299, %v305
      %v308 = vlaneseq
      %v309 = vand.u32 %v308, 127
      %vm310 = vcmp.lt.s32.totalorder %v309, 32
      %v311 = vsel %vm310, 1, 0
      %vm312 = vcmp.eq.s32.totalorder %v311, 1
      %v313 = vsel %vm312, %v306, 0.0
      %v314 = vsel %vm312, %v307, 0.0
      %v315 = vmul.f32 %v313, %v313
      %v316 = vmul.f32 %v314, %v314
      %317 = vadd.xlane.f32.xlu0 %v315
      %v318 = vpop.xlane.xlu0 %317
      %319 = vadd.xlane.f32.xlu0 %v316
      %v320 = vpop.xlane.xlu0 %319
      %v321 = vmul.f32 %v318, 0.03125
      %v322 = vmul.f32 %v320, 0.03125
      %v323 = vadd.f32 %v321, 1e-12
      %v324 = vadd.f32 %v322, 1e-12
      %v325 = vrsqrt.pop %v323
      %v326 = vrsqrt.pop %v324
      %v327 = vmul.f32 %v313, %v325
      %v328 = vmul.f32 %v314, %v326
      %v329 = vld [vmem:[%s5] sm:$0x1]
      %v331 = vlaneseq
      %v332 = vshrl.u32 %v331, 7
      %v333 = vsub.s32 0, %v332
      %v334 = vrot.slane %v329, %v333
      %v336 = vmul.f32 %v334, %v327
      %v337 = vmul.f32 %v334, %v328
      %v338 = vld [vmem:[%s6] sm:$0x1]
      %v340 = vlaneseq
      %v341 = vshrl.u32 %v340, 7
      %v342 = vsub.s32 0, %v341
      %v343 = vrot.slane %v338, %v342
      %v345 = vadd.f32 %v336, %v343
      %v346 = vadd.f32 %v337, %v343
      %347 = vst [vmem:[#allocation9] sm:$0xff] %v345
      %348 = vst [vmem:[#allocation9 + $0x8] sm:$0xff] %v346
    $region49: #{tpu_custom_call.1} parent=1 // pred_fallthru
      _
    // Predicated region
    $region50: #{tpu_custom_call.1} parent=1 // pred_check
      _
    $region51: #{tpu_custom_call.1} parent=1 // pred_check_branch
      %350 = sbr.rel (0) target = $region53
    $region52: #{tpu_custom_call.1} parent=1 // pred_region
      %s352 = ssub.s32 256, 256
      %353 = vsyncadd [#allocation5], %s352
      %s354 = sshll.u32 [#allocation9], 4
      %s355 = int_to_ptr.vmem [resolvable:$true] %s354
      %360 = dma.vmem_to_hbm [thread:$0]  %s355, 256, %s7, [#allocation5], 128, 128, 8
    $region53: #{tpu_custom_call.1} parent=1 // pred_fallthru
      _
    // Predicated region
    $region54: #{tpu_custom_call.1} parent=1 // pred_check
      _
    $region55: #{tpu_custom_call.1} parent=1 // pred_check_branch
      %362 = sbr.rel (0) target = $region57
    $region56: #{tpu_custom_call.1} parent=1 // pred_region
      %363 = dma.done [#allocation5], 256
    $region57: #{tpu_custom_call.1} parent=1 // pred_fallthru
      _
    %364 = vsyncpa [#allocation4], 1
    %365 = vsyncpa [#allocation7], 1
    %366 = vsyncpa [#allocation5], 1

</llo_original>
